<compile_context>
chip_gen: v6e
topology: v6e:2x2x1
jax: 0.10.0
libtpu: 0.0.40
codegen_flags: <defaults>
</compile_context>

<pallas_src>
import jax
import jax.numpy as jnp
from jax.experimental import pallas as pl
from jax.experimental.pallas import tpu as pltpu


# ----------------------------------------------------------------------------
# Individual 3-D transforms.  Each exposes:
#   smem_params(): small per-channel parameter arrays that must live in SMEM
#   apply(x, c, refs): pure elementwise math executed INSIDE the Pallas kernel
# ----------------------------------------------------------------------------
class Normalize3D:
    """Per-channel normalization: (x - mean[c]) * inv_std[c]."""

    def __init__(self, mean, std):
        self.mean = jnp.asarray(mean, jnp.float32)
        # Precompute the reciprocal in the wrapper -> no per-voxel vector divide.
        self.inv_std = 1.0 / jnp.asarray(std, jnp.float32)

    def smem_params(self):
        return (self.mean, self.inv_std)

    def apply(self, x, c, refs):
        mean_ref, inv_std_ref = refs
        return (x - mean_ref[c]) * inv_std_ref[c]


class IntensityWindow3D:
    """Clip to [lo, hi] and rescale to [0, 1] (multiply by precomputed 1/range)."""

    def __init__(self, lo, hi):
        self.lo = float(lo)
        self.hi = float(hi)
        self.inv_range = 1.0 / (self.hi - self.lo)

    def smem_params(self):
        return ()

    def apply(self, x, c, refs):
        y = jnp.clip(x, self.lo, self.hi)
        return (y - self.lo) * self.inv_range


class Gamma3D:
    """Gamma correction on [0, 1] intensities: x ** gamma (exp/log on EUP)."""

    def __init__(self, gamma, eps=1e-6):
        self.gamma = float(gamma)
        self.eps = float(eps)

    def smem_params(self):
        return ()

    def apply(self, x, c, refs):
        return jnp.exp(self.gamma * jnp.log(x + self.eps))


# ----------------------------------------------------------------------------
# Compose3D: applies the transforms sequentially, fused in one Pallas kernel.
# ----------------------------------------------------------------------------
class Compose3D:
    def __init__(self, transforms):
        self.transforms = list(transforms)

    def __call__(self, voxels):
        B, C, D, H, W = voxels.shape
        S = D * H * W
        itemsize = jnp.dtype(voxels.dtype).itemsize

        # ---- lane-dense relayout ------------------------------------------
        # Trailing (lane) dim: largest multiple of 128 (<= 2048) dividing S.
        lanes = 0
        for cand in (2048, 1024, 512, 256, 128):
            if S % cand == 0:
                lanes = cand
                break
        if lanes == 0:
            # TODO(synk): spatial sizes with no multiple-of-128 factor keep the
            # original (D*H, W) layout; a real pipeline would pad to 128 lanes.
            lanes = W
        rows = S // lanes

        xf = voxels.reshape(B * C, rows, lanes)

        # ---- row tiling: ~2 MiB per block, sublane dim multiple of 8 -------
        target_rows = max(8, (2 * 1024 * 1024) // (lanes * itemsize))
        if rows <= target_rows:
            tile_rows = rows                       # full extent
        else:
            tile_rows = (target_rows // 8) * 8     # multiple of 8
        n_row_tiles = pl.cdiv(rows, tile_rows)

        # Gather per-transform SMEM parameter arrays.
        params = []
        param_counts = []
        for t in self.transforms:
            p = t.smem_params()
            param_counts.append(len(p))
            params.extend(p)
        n_params = len(params)
        transforms = self.transforms

        def kernel(*refs):
            param_refs = refs[:n_params]
            x_ref = refs[n_params]
            o_ref = refs[n_params + 1]
            c = pl.program_id(0) % C       # channel index of this (B*C) slab
            x = x_ref[...]                 # (tile_rows, lanes) tile in VMEM
            off = 0
            for t, k in zip(transforms, param_counts):
                x = t.apply(x, c, param_refs[off:off + k])
                off += k
            o_ref[...] = x

        vox_spec = pl.BlockSpec(
            (pl.Squeezed(), tile_rows, lanes), lambda i, j: (i, j, 0)
        )
        in_specs = (
            [pl.BlockSpec(memory_space=pltpu.MemorySpace.SMEM)] * n_params
            + [vox_spec]
        )

        numel = B * C * S
        cost = pl.CostEstimate(
            flops=8 * numel,
            transcendentals=2 * numel,
            bytes_accessed=2 * numel * itemsize,
        )

        out = pl.pallas_call(
            kernel,
            out_shape=jax.ShapeDtypeStruct(xf.shape, xf.dtype),
            grid=(B * C, n_row_tiles),
            in_specs=in_specs,
            out_specs=pl.BlockSpec(
                (pl.Squeezed(), tile_rows, lanes), lambda i, j: (i, j, 0)
            ),
            compiler_params=pltpu.CompilerParams(
                dimension_semantics=("parallel", "parallel")
            ),
            cost_estimate=cost,
        )(*params, xf)
        return out.reshape(B, C, D, H, W)


# ----------------------------------------------------------------------------
# Pure-JAX reference of the same composed forward pass.
# ----------------------------------------------------------------------------
def reference(x, mean, std, lo, hi, gamma, eps=1e-6):
    B, C = x.shape[:2]
    m = mean.reshape(1, C, 1, 1, 1)
    s = std.reshape(1, C, 1, 1, 1)
    y = (x - m) / s
    y = jnp.clip(y, lo, hi)
    y = (y - lo) / (hi - lo)
    y = jnp.exp(gamma * jnp.log(y + eps))
    return y


if __name__ == "__main__":
    key = jax.random.PRNGKey(0)
    B, C, D, H, W = 2, 4, 16, 16, 16

    # Deterministic synthetic voxel grid and transform parameters.
    x = jax.random.normal(key, (B, C, D, H, W), dtype=jnp.float32) * 2.0 + 0.5
    mean = jnp.linspace(-0.5, 0.5, C, dtype=jnp.float32)
    std = jnp.linspace(0.8, 1.2, C, dtype=jnp.float32)
    lo, hi, gamma = -2.0, 2.0, 0.7

    compose = Compose3D([
        Normalize3D(mean, std),
        IntensityWindow3D(lo, hi),
        Gamma3D(gamma),
    ])

    out = compose(x)
    out = jax.block_until_ready(out)

    ref = reference(x, mean, std, lo, hi, gamma)
    assert out.shape == x.shape and out.dtype == x.dtype
    assert jnp.allclose(out, ref, rtol=1e-5, atol=1e-5), (
        float(jnp.max(jnp.abs(out - ref)))
    )
    print("KERNEL_OK")
</pallas_src>

<mosaic_0001>
module attributes {stable_mosaic.version = 11 : i64} {
  func.func @kernel(%arg0: i32, %arg1: i32, %arg2: memref<4xf32, #tpu.memory_space<smem>>, %arg3: memref<4xf32, #tpu.memory_space<smem>>, %arg4: memref<1x2x2048xf32, #tpu.memory_space<vmem>>, %arg5: memref<1x2x2048xf32, #tpu.memory_space<vmem>>) attributes {dimension_semantics = [#tpu.dimension_semantics<parallel>, #tpu.dimension_semantics<parallel>], iteration_bounds = array<i64: 8, 1>, scalar_prefetch = 0 : i64, scratch_operands = 0 : i64, tpu.core_type = #tpu.core_type<tc>, window_params = [{transform_indices = @transform_0, window_bounds = array<i64: 4>}, {transform_indices = @transform_1, window_bounds = array<i64: 4>}, {transform_indices = @transform_2, window_bounds = array<i64: 1, 2, 2048>}, {transform_indices = @transform_3, window_bounds = array<i64: 1, 2, 2048>}]} {
    %c4_i32 = arith.constant 4 : i32
    %c0_i32 = arith.constant 0 : i32
    %0 = arith.cmpi eq, %c4_i32, %c0_i32 : i32
    %c1_i32 = arith.constant 1 : i32
    %1 = arith.select %0, %c1_i32, %c4_i32 : i32
    %2 = arith.remsi %arg0, %1 : i32
    %c0_i32_0 = arith.constant 0 : i32
    %3 = arith.cmpi ne, %2, %c0_i32_0 : i32
    %c0_i32_1 = arith.constant 0 : i32
    %4 = arith.cmpi slt, %2, %c0_i32_1 : i32
    %c0_i32_2 = arith.constant 0 : i32
    %5 = arith.cmpi slt, %1, %c0_i32_2 : i32
    %6 = arith.xori %4, %5 : i1
    %7 = arith.andi %6, %3 : i1
    %8 = arith.addi %2, %1 : i32
    %9 = arith.select %7, %8, %2 : i32
    %c0 = arith.constant 0 : index
    %c0_3 = arith.constant 0 : index
    %c0_4 = arith.constant 0 : index
    %10 = vector.load %arg4[%c0, %c0_3, %c0_4] : memref<1x2x2048xf32, #tpu.memory_space<vmem>>, vector<1x2x2048xf32>
    %11 = vector.shape_cast %10 : vector<1x2x2048xf32> to vector<2x2048xf32>
    %12 = arith.index_cast %9 : i32 to index
    %13 = memref.load %arg2[%12] : memref<4xf32, #tpu.memory_space<smem>>
    %14 = vector.broadcast %13 : f32 to vector<2x2048xf32>
    %15 = arith.subf %11, %14 : vector<2x2048xf32>
    %16 = arith.index_cast %9 : i32 to index
    %17 = memref.load %arg3[%16] : memref<4xf32, #tpu.memory_space<smem>>
    %18 = vector.broadcast %17 : f32 to vector<2x2048xf32>
    %19 = arith.mulf %15, %18 : vector<2x2048xf32>
    %cst = arith.constant -2.000000e+00 : f32
    %cst_5 = arith.constant 2.000000e+00 : f32
    %20 = vector.broadcast %cst : f32 to vector<2x2048xf32>
    %21 = arith.maximumf %20, %19 : vector<2x2048xf32>
    %22 = vector.broadcast %cst_5 : f32 to vector<2x2048xf32>
    %23 = arith.minimumf %22, %21 : vector<2x2048xf32>
    %cst_6 = arith.constant -2.000000e+00 : f32
    %24 = vector.broadcast %cst_6 : f32 to vector<2x2048xf32>
    %25 = arith.subf %23, %24 : vector<2x2048xf32>
    %cst_7 = arith.constant 2.500000e-01 : f32
    %26 = vector.broadcast %cst_7 : f32 to vector<2x2048xf32>
    %27 = arith.mulf %25, %26 : vector<2x2048xf32>
    %cst_8 = arith.constant 9.99999997E-7 : f32
    %28 = vector.broadcast %cst_8 : f32 to vector<2x2048xf32>
    %29 = arith.addf %27, %28 : vector<2x2048xf32>
    %30 = math.log %29 : vector<2x2048xf32>
    %cst_9 = arith.constant 0.699999988 : f32
    %31 = vector.broadcast %cst_9 : f32 to vector<2x2048xf32>
    %32 = arith.mulf %31, %30 : vector<2x2048xf32>
    %33 = math.exp %32 : vector<2x2048xf32>
    %c0_10 = arith.constant 0 : index
    %c0_11 = arith.constant 0 : index
    %c0_12 = arith.constant 0 : index
    %34 = vector.load %arg5[%c0_10, %c0_11, %c0_12] : memref<1x2x2048xf32, #tpu.memory_space<vmem>>, vector<1x2x2048xf32>
    %35 = vector.shape_cast %34 : vector<1x2x2048xf32> to vector<2x2048xf32>
    %36 = vector.shape_cast %33 : vector<2x2048xf32> to vector<1x2x2048xf32>
    tpu.vector_store %arg5[%c0_10, %c0_11, %c0_12], %36 {strides = array<i32>} : memref<1x2x2048xf32, #tpu.memory_space<vmem>>, vector<1x2x2048xf32>,
    return
  }
  func.func @transform_0(%arg0: i32, %arg1: i32) -> i32 {
    %c0_i32 = arith.constant 0 : i32
    %c0_i32_0 = arith.constant 0 : i32
    return %c0_i32 : i32
  }
  func.func @transform_1(%arg0: i32, %arg1: i32) -> i32 {
    %c0_i32 = arith.constant 0 : i32
    %c0_i32_0 = arith.constant 0 : i32
    return %c0_i32 : i32
  }
  func.func @transform_2(%arg0: i32, %arg1: i32) -> (i32, i32, i32) {
    %c0_i32 = arith.constant 0 : i32
    %c0_i32_0 = arith.constant 0 : i32
    return %arg0, %arg1, %c0_i32 : i32, i32, i32
  }
  func.func @transform_3(%arg0: i32, %arg1: i32) -> (i32, i32, i32) {
    %c0_i32 = arith.constant 0 : i32
    %c0_i32_0 = arith.constant 0 : i32
    return %arg0, %arg1, %c0_i32 : i32, i32, i32
  }
}

</mosaic_0001>

<llo_original>
// kernel: tpu_custom_call.1
$region0: #{tpu_custom_call.1}
  #allocation0 [shape = 'u32[]', space=smem, size = 0x4, offset = 0x4, fixed_abs, tag = 'smem constant byte address 0x4 - core index']
  #allocation1 [shape = 'u32[144,128]{1,0:T(1,128)}', space=vmem, size = 0x12000, scoped, tag = 'internal scratch']
  %s0 = inlined_call_operand.hbm [shape: f32[4], index: 0, kind: input, shape index: {}]
  %s1 = inlined_call_operand.vmem [shape: f32[4], index: 1, kind: input, shape index: {}]
  %s2 = inlined_call_operand.hbm [shape: f32[8,2,2048], index: 2, kind: input, shape index: {}]
  %s3 = inlined_call_operand.hbm [shape: f32[8,2,2048], index: 3, kind: output, shape index: {}]
  %s4 = sld [smem:[#allocation0]]
  $region57: #{tpu_custom_call.1} parent=0
    _
  %s6 = ssub.s32 1, %s4
  %s7 = scalar_select 0, %s6, %s4
  $region1: #{tpu_custom_call.1} parent=0
    #allocation2 [shape = 'u8[512]{0}', space=smem, size = 0x200, scoped, tag = 'input window, operand 0, single buffered']
    #allocation3 [shape = 's32[2]{0}', space=sflag, size = 0x8, scoped, tag = 'scoped memory for tpu_custom_call.1']
    #allocation4 [shape = 's32[2]{0}', space=sflag, size = 0x8, scoped, tag = 'scoped memory for tpu_custom_call.1']
    #allocation5 [shape = 's32[2]{0}', space=sflag, size = 0x8, scoped, tag = 'scoped memory for tpu_custom_call.1']
    #allocation6 [shape = 's32[2]{0}', space=sflag, size = 0x8, scoped, tag = 'scoped memory for tpu_custom_call.1']
    #allocation7 [shape = 'u8[512]{0}', space=smem, size = 0x200, scoped, tag = 'input window, operand 1, single buffered']
    #allocation8 [shape = 'u8[32768]{0}', space=vmem, size = 0x8000, scoped, tag = 'input window, operand 2']
    #allocation9 [shape = 'u8[32768]{0}', space=vmem, size = 0x8000, scoped, tag = 'output window, operand 0']
    %8 = vsyncpa [#allocation5], 0
    %9 = vsyncpa [#allocation6], 0
    %10 = vsyncpa [#allocation3], 0
    %s11 = scalar_lea.sflag [#allocation3], 1
    %12 = vsyncpa %s11, 0
    %13 = vsyncpa [#allocation4], 0
    %s14 = scalar_lea.sflag [#allocation4], 1
    %15 = vsyncpa %s14, 0
    loop: start=0, step=1, limit=10
    $region2: #{tpu_custom_call.1} parent=1 // loop_pre_header
      _
    $region3: #{tpu_custom_call.1} parent=1 // loop_header
      %s17 = sphi 0, %s21
      %p18 = scmp.ge.s32.totalorder %s17, 10
      %s24 = sphi 0, %s36
      %s25 = sphi 0, %s32
      %s26 = sphi 0, %s24
      %s27 = sphi 0, %s25
      %s28 = sphi 0, %s26
      %s29 = sphi 0, %s27
      %s37 = sphi 0, %s37
      %s39 = sphi 0, %s37
      %s40 = sphi 0, %s39
      %s54 = sphi 0, %s40
      %s58 = sphi 0, %s58
      %s60 = sphi 0, %s58
      %s61 = sphi 0, %s60
      %s75 = sphi 0, %s61
      %s83 = sphi 0, %s85
      %s86 = sphi 0, %s83
      %s87 = sphi 0, %s86
      %s103 = sphi 0, %s87
      %s111 = sphi 0, %s113
      %s114 = sphi 0, %s111
      %s115 = sphi 0, %s114
      %s131 = sphi 0, %s115
    $region4: #{tpu_custom_call.1} parent=1 // loop_header_branch
      %20 = sbr.rel (%p18) target = $region8
    $region5: #{tpu_custom_call.1} parent=1 // loop_body
      %s22 = ssub.s32 %s17, 1
      %s23 = ssub.s32 %s17, 2
      %s30 = sadd.s32 1, %s25
      %p31 = scmp.ge.s32.totalorder %s30, 1
      %s32 = scalar_select %p31, 0, %s30
      %s33 = sadd.s32 1, %s24
      %s34 = scalar_select %p31, %s33, %s24
      %p35 = scmp.ge.s32.totalorder %s34, 8
      %s36 = scalar_select %p35, 0, %s34
      %s38 = sadd.s32 %s37, 1
      %p41 = scmp.eq.s32.totalorder %s17, 7
      %p42 = scmp.ne.s32.totalorder %s37, %s39
      %p43 = scmp.eq.s32.totalorder %s17, 0
      %p44 = por %p42, %p43
      %p45 = scmp.ne.s32.totalorder %s37, %s39
      %p46 = scmp.eq.s32.totalorder %s22, 7
      %p47 = por %p45, %p46
      %p48 = scmp.ne.s32.totalorder %s39, %s40
      %p49 = scmp.eq.s32.totalorder %s22, 0
      %p50 = por %p48, %p49
      %p51 = scmp.ne.s32.totalorder %s39, %s40
      %p52 = scmp.eq.s32.totalorder %s23, 7
      %p53 = por %p51, %p52
      %p55 = scmp.ne.s32.totalorder %s40, %s54
      %p56 = scmp.eq.s32.totalorder %s23, 0
      %p57 = por %p55, %p56
      %s59 = sadd.s32 %s58, 1
      %p62 = scmp.eq.s32.totalorder %s17, 7
      %p63 = scmp.ne.s32.totalorder %s58, %s60
      %p64 = scmp.eq.s32.totalorder %s17, 0
      %p65 = por %p63, %p64
      %p66 = scmp.ne.s32.totalorder %s58, %s60
      %p67 = scmp.eq.s32.totalorder %s22, 7
      %p68 = por %p66, %p67
      %p69 = scmp.ne.s32.totalorder %s60, %s61
      %p70 = scmp.eq.s32.totalorder %s22, 0
      %p71 = por %p69, %p70
      %p72 = scmp.ne.s32.totalorder %s60, %s61
      %p73 = scmp.eq.s32.totalorder %s23, 7
      %p74 = por %p72, %p73
      %p76 = scmp.ne.s32.totalorder %s61, %s75
      %p77 = scmp.eq.s32.totalorder %s23, 0
      %p78 = por %p76, %p77
      %s79 = ssub.s32 %s24, %s36
      %s80 = ssub.s32 %s25, %s32
      %s81 = sor.u32 %s79, %s80
      %p82 = scmp.eq.s32.totalorder %s81, 0
      %s84 = sadd.s32 %s83, 1
      %s85 = scalar_select %p82, %s83, %s84
      %p88 = pneg %p82
      %p89 = scmp.eq.s32.totalorder %s17, 7
      %p90 = por %p88, %p89
      %p91 = scmp.ne.s32.totalorder %s83, %s86
      %p92 = scmp.eq.s32.totalorder %s17, 0
      %p93 = por %p91, %p92
      %p94 = scmp.ne.s32.totalorder %s83, %s86
      %p95 = scmp.eq.s32.totalorder %s22, 7
      %p96 = por %p94, %p95
      %p97 = scmp.ne.s32.totalorder %s86, %s87
      %p98 = scmp.eq.s32.totalorder %s22, 0
      %p99 = por %p97, %p98
      %p100 = scmp.ne.s32.totalorder %s86, %s87
      %p101 = scmp.eq.s32.totalorder %s23, 7
      %p102 = por %p100, %p101
      %p104 = scmp.ne.s32.totalorder %s87, %s103
      %p105 = scmp.eq.s32.totalorder %s23, 0
      %p106 = por %p104, %p105
      %s107 = ssub.s32 %s24, %s36
      %s108 = ssub.s32 %s25, %s32
      %s109 = sor.u32 %s107, %s108
      %p110 = scmp.eq.s32.totalorder %s109, 0
      %s112 = sadd.s32 %s111, 1
      %s113 = scalar_select %p110, %s111, %s112
      %p116 = pneg %p110
      %p117 = scmp.eq.s32.totalorder %s17, 7
      %p118 = por %p116, %p117
      %p119 = scmp.ne.s32.totalorder %s111, %s114
      %p120 = scmp.eq.s32.totalorder %s17, 0
      %p121 = por %p119, %p120
      %p122 = scmp.ne.s32.totalorder %s111, %s114
      %p123 = scmp.eq.s32.totalorder %s22, 7
      %p124 = por %p122, %p123
      %p125 = scmp.ne.s32.totalorder %s114, %s115
      %p126 = scmp.eq.s32.totalorder %s22, 0
      %p127 = por %p125, %p126
      %p128 = scmp.ne.s32.totalorder %s114, %s115
      %p129 = scmp.eq.s32.totalorder %s23, 7
      %p130 = por %p128, %p129
      %p132 = scmp.ne.s32.totalorder %s115, %s131
      %p133 = scmp.eq.s32.totalorder %s23, 0
      %p134 = por %p132, %p133
      %p135 = scmp.le.s32.totalorder 1, %s17
      %p136 = scmp.lt.s32.totalorder %s17, 9
      %p137 = pnand %p135, %p136
      %p138 = pneg %p137
      // Predicated region
      $region9: #{tpu_custom_call.1} parent=5 // pred_check
        _
      $region10: #{tpu_custom_call.1} parent=5 // pred_check_branch
        %140 = sbr.rel (%p137) target = $region12
      $region11: #{tpu_custom_call.1} parent=5 // pred_region
        %s141 = ssub.s32 %s17, 1
        // Predicated region
        $region13: #{tpu_custom_call.1} parent=11 // pred_check
          %p142 = pneg %p50
        $region14: #{tpu_custom_call.1} parent=11 // pred_check_branch
          %144 = sbr.rel (%p142) target = $region16
        $region15: #{tpu_custom_call.1} parent=11 // pred_region
          %s146 = ssub.s32 16, 16
          %147 = vsyncadd [#allocation5], %s146
          %150 = dma.hbm_to_smem %s0, 16, [#allocation2], [#allocation5]
        $region16: #{tpu_custom_call.1} parent=11 // pred_fallthru
          _
        // Predicated region
        $region17: #{tpu_custom_call.1} parent=11 // pred_check
          %p151 = pneg %p71
        $region18: #{tpu_custom_call.1} parent=11 // pred_check_branch
          %153 = sbr.rel (%p151) target = $region20
        $region19: #{tpu_custom_call.1} parent=11 // pred_region
          %s155 = ssub.s32 16, 16
          %156 = vsyncadd [#allocation6], %s155
          %s158 = sshll.u32 %s1, 4
          %s159 = int_to_ptr.vmem [resolvable:$true] %s158
          %161 = dma.vmem_to_smem %s159, 16, [#allocation7], [#allocation6]
        $region20: #{tpu_custom_call.1} parent=11 // pred_fallthru
          _
      $region12: #{tpu_custom_call.1} parent=5 // pred_fallthru
        _
      %p162 = scmp.lt.s32.totalorder %s17, 8
      // Predicated region
      $region21: #{tpu_custom_call.1} parent=5 // pred_check
        %p163 = pneg %p162
      $region22: #{tpu_custom_call.1} parent=5 // pred_check_branch
        %165 = sbr.rel (%p163) target = $region24
      $region23: #{tpu_custom_call.1} parent=5 // pred_region
        // Predicated region
        $region25: #{tpu_custom_call.1} parent=23 // pred_check
          %p166 = pneg %p93
        $region26: #{tpu_custom_call.1} parent=23 // pred_check_branch
          %168 = sbr.rel (%p166) target = $region28
        $region27: #{tpu_custom_call.1} parent=23 // pred_region
          %s169 = sand.u32 %s83, 1
          %s170 = scalar_lea.sflag [#allocation3], %s169
          %s171 = sand.u32 %s83, 1
          %s172 = smul.addr %s171, 32
          %s173 = scalar_lea.vmem [#allocation8], %s172
          %s175 = ssub.s32 512, 512
          %176 = vsyncadd %s170, %s175
          %s177 = smul.addr %s25, 16
          %s178 = smul.addr %s24, 16
          %s179 = sadd.s32 %s177, %s178
          %s180 = smul.addr %s179, 32
          %s181 = scalar_lea.hbm %s2, %s180
          %s183 = sshll.u32 %s173, 4
          %s184 = int_to_ptr.vmem [resolvable:$true] %s183
          %186 = dma.hbm_to_vmem [thread:$0]  %s181, 512, %s184, %s170
        $region28: #{tpu_custom_call.1} parent=23 // pred_fallthru
          _
      $region24: #{tpu_custom_call.1} parent=5 // pred_fallthru
        _
      %p187 = scmp.le.s32.totalorder 1, %s17
      %p188 = scmp.lt.s32.totalorder %s17, 9
      %p189 = pnand %p187, %p188
      %p190 = pneg %p189
      // Predicated region
      $region29: #{tpu_custom_call.1} parent=5 // pred_check
        _
      $region30: #{tpu_custom_call.1} parent=5 // pred_check_branch
        %192 = sbr.rel (%p189) target = $region32
      $region31: #{tpu_custom_call.1} parent=5 // pred_region
        %s193 = ssub.s32 %s17, 1
        // Predicated region
        $region33: #{tpu_custom_call.1} parent=31 // pred_check
          %p194 = pneg %p50
        $region34: #{tpu_custom_call.1} parent=31 // pred_check_branch
          %196 = sbr.rel (%p194) target = $region36
        $region35: #{tpu_custom_call.1} parent=31 // pred_region
          %197 = dma.done [#allocation5], 16
        $region36: #{tpu_custom_call.1} parent=31 // pred_fallthru
          _
        // Predicated region
        $region37: #{tpu_custom_call.1} parent=31 // pred_check
          %p198 = pneg %p71
        $region38: #{tpu_custom_call.1} parent=31 // pred_check_branch
          %200 = sbr.rel (%p198) target = $region40
        $region39: #{tpu_custom_call.1} parent=31 // pred_region
          %201 = dma.done [#allocation6], 16
        $region40: #{tpu_custom_call.1} parent=31 // pred_fallthru
          _
        %s202 = sand.u32 %s86, 1
        %s203 = scalar_lea.sflag [#allocation3], %s202
        %s204 = sand.u32 %s86, 1
        %s205 = smul.addr %s204, 32
        %s206 = scalar_lea.vmem [#allocation8], %s205
        // Predicated region
        $region41: #{tpu_custom_call.1} parent=31 // pred_check
          %p207 = pneg %p99
        $region42: #{tpu_custom_call.1} parent=31 // pred_check_branch
          %209 = sbr.rel (%p207) target = $region44
        $region43: #{tpu_custom_call.1} parent=31 // pred_region
          %210 = dma.done %s203, 512
        $region44: #{tpu_custom_call.1} parent=31 // pred_fallthru
          _
        %211 = sfence
        %p212 = pneg %p50
        %p213 = pneg %p47
        %p214 = pneg %p71
        %p215 = pneg %p68
        %s216 = sand.u32 %s86, 1
        %s217 = scalar_lea.sflag [#allocation3], %s216
        %s218 = sand.u32 %s86, 1
        %s219 = smul.addr %s218, 32
        %s220 = scalar_lea.vmem [#allocation8], %s219
        %p221 = pneg %p99
        %p222 = pneg %p96
        %p223 = pneg %p127
        %p224 = pneg %p124
        %s225 = sand.u32 %s114, 1
        %s226 = scalar_lea.sflag [#allocation4], %s225
        %s227 = sand.u32 %s114, 1
        %s228 = smul.addr %s227, 32
        %s229 = scalar_lea.vmem [#allocation9], %s228
        %p230 = scmp.lt.s32.totalorder %s26, 0
        %s231 = ssub.s32 0, %s26
        %s232 = scalar_select %p230, %s231, %s26
        %s233 = sand.u32 %s232, 3
        %s234 = ssub.s32 0, %s233
        %s235 = scalar_select %p230, %s234, %s233
        %p236 = scmp.ne.s32.totalorder %s235, 0
        %p237 = scmp.lt.s32.totalorder %s235, 0
        %p238 = pnand %p237, %p236
        %p239 = pneg %p238
        %s240 = sadd.s32 %s235, 4
        %s241 = scalar_select %p239, %s240, %s235
        %v242 = vld [vmem:[%s206] sm:$0xff]
        %v243 = vld [vmem:[%s206 + $0x8] sm:$0xff]
        %v244 = vld [vmem:[%s206 + $0x10] sm:$0xff]
        %v245 = vld [vmem:[%s206 + $0x18] sm:$0xff]
        %s246 = sld [smem:[#allocation2 + %s241]]
        %v247 = vstv %s246
        %v248 = vsub.f32 %v242, %v247
        %v249 = vsub.f32 %v243, %v247
        %v250 = vsub.f32 %v244, %v247
        %v251 = vsub.f32 %v245, %v247
        %s252 = sld [smem:[#allocation7 + %s241]]
        %v253 = vstv %s252
        %v254 = vmul.f32 %v248, %v253
        %v255 = vmul.f32 %v249, %v253
        %v256 = vmul.f32 %v250, %v253
        %v257 = vmul.f32 %v251, %v253
        %v258 = vmax.f32 %v254, -2.0
        %v259 = vmax.f32 %v255, -2.0
        %v260 = vmax.f32 %v256, -2.0
        %v261 = vmax.f32 %v257, -2.0
        %v262 = vmin.f32 %v258, 2.0
        %v263 = vmin.f32 %v259, 2.0
        %v264 = vmin.f32 %v260, 2.0
        %v265 = vmin.f32 %v261, 2.0
        %v266 = vsub.f32 %v262, -2.0
        %v267 = vsub.f32 %v263, -2.0
        %v268 = vsub.f32 %v264, -2.0
        %v269 = vsub.f32 %v265, -2.0
        %v270 = vmul.f32 %v266, 0.25
        %v271 = vmul.f32 %v267, 0.25
        %v272 = vmul.f32 %v268, 0.25
        %v273 = vmul.f32 %v269, 0.25
        %v274 = vadd.f32 %v270, 1e-06
        %v275 = vadd.f32 %v271, 1e-06
        %v276 = vadd.f32 %v272, 1e-06
        %v277 = vadd.f32 %v273, 1e-06
        %v278 = vlog2.pop %v274
        %v279 = vmul.f32 %v278, 0.6931472
        %v280 = vlog2.pop %v275
        %v281 = vmul.f32 %v280, 0.6931472
        %v282 = vlog2.pop %v276
        %v283 = vmul.f32 %v282, 0.6931472
        %v284 = vlog2.pop %v277
        %v285 = vmul.f32 %v284, 0.6931472
        %v286 = vmul.f32 %v279, 0.7
        %v287 = vmul.f32 %v281, 0.7
        %v288 = vmul.f32 %v283, 0.7
        %v289 = vmul.f32 %v285, 0.7
        %v290 = vmul.f32 %v286, 1.442695
        %v291 = vpow.pop %v290
        %v292 = vmul.f32 %v287, 1.442695
        %v293 = vpow.pop %v292
        %v294 = vmul.f32 %v288, 1.442695
        %v295 = vpow.pop %v294
        %v296 = vmul.f32 %v289, 1.442695
        %v297 = vpow.pop %v296
        %298 = vst [vmem:[%s229] sm:$0xff] %v291
        %299 = vst [vmem:[%s229 + $0x8] sm:$0xff] %v293
        %300 = vst [vmem:[%s229 + $0x10] sm:$0xff] %v295
        %301 = vst [vmem:[%s229 + $0x18] sm:$0xff] %v297
        %s302 = sand.u32 %s114, 1
        %s303 = scalar_lea.sflag [#allocation4], %s302
        %s304 = sand.u32 %s114, 1
        %s305 = smul.addr %s304, 32
        %s306 = scalar_lea.vmem [#allocation9], %s305
        // Predicated region
        $region45: #{tpu_custom_call.1} parent=31 // pred_check
          %p307 = pneg %p124
        $region46: #{tpu_custom_call.1} parent=31 // pred_check_branch
          %309 = sbr.rel (%p307) target = $region48
        $region47: #{tpu_custom_call.1} parent=31 // pred_region
          %s311 = ssub.s32 512, 512
          %312 = vsyncadd %s303, %s311
          %s313 = smul.addr %s27, 16
          %s314 = smul.addr %s26, 16
          %s315 = sadd.s32 %s313, %s314
          %s316 = smul.addr %s315, 32
          %s317 = scalar_lea.hbm %s3, %s316
          %s319 = sshll.u32 %s306, 4
          %s320 = int_to_ptr.vmem [resolvable:$true] %s319
          %322 = dma.vmem_to_hbm [thread:$0]  %s320, 512, %s317, %s303
        $region48: #{tpu_custom_call.1} parent=31 // pred_fallthru
          _
      $region32: #{tpu_custom_call.1} parent=5 // pred_fallthru
        _
      %p323 = scmp.le.s32.totalorder 2, %s17
      // Predicated region
      $region49: #{tpu_custom_call.1} parent=5 // pred_check
        %p324 = pneg %p323
      $region50: #{tpu_custom_call.1} parent=5 // pred_check_branch
        %326 = sbr.rel (%p324) target = $region52
      $region51: #{tpu_custom_call.1} parent=5 // pred_region
        %s327 = ssub.s32 %s17, 2
        // Predicated region
        $region53: #{tpu_custom_call.1} parent=51 // pred_check
          %p328 = pneg %p130
        $region54: #{tpu_custom_call.1} parent=51 // pred_check_branch
          %330 = sbr.rel (%p328) target = $region56
        $region55: #{tpu_custom_call.1} parent=51 // pred_region
          %s331 = sand.u32 %s115, 1
          %s332 = scalar_lea.sflag [#allocation4], %s331
          %s333 = sand.u32 %s115, 1
          %s334 = smul.addr %s333, 32
          %s335 = scalar_lea.vmem [#allocation9], %s334
          %336 = dma.done %s332, 512
        $region56: #{tpu_custom_call.1} parent=51 // pred_fallthru
          _
      $region52: #{tpu_custom_call.1} parent=5 // pred_fallthru
        _
    $region6: #{tpu_custom_call.1} parent=1 // loop_footer
      %s21 = sadd.s32 1, %s17
    $region7: #{tpu_custom_call.1} parent=1 // loop_footer_branch
      %16 = sbr.rel target = $region3
    $region8: #{tpu_custom_call.1} parent=1 // loop_exit
      _
    %337 = vsyncpa [#allocation3], 1
    %s338 = scalar_lea.sflag [#allocation3], 1
    %339 = vsyncpa %s338, 1
    %340 = vsyncpa [#allocation4], 1
    %s341 = scalar_lea.sflag [#allocation4], 1
    %342 = vsyncpa %s341, 1
    %343 = vsyncpa [#allocation5], 1
    %s344 = scalar_lea.sflag [#allocation5], 1
    %345 = vsyncpa %s344, 1
    %346 = vsyncpa [#allocation6], 1
    %s347 = scalar_lea.sflag [#allocation6], 1
    %348 = vsyncpa %s347, 1

</llo_original>
